<compile_context>
chip_gen: v7x
topology: tpu7x:2x2x1
jax: 0.10.0
libtpu: 0.0.40
codegen_flags: <defaults>
</compile_context>

<pallas_src>
import functools

import jax
import jax.numpy as jnp
from jax.experimental import pallas as pl
from jax.experimental.pallas import tpu as pltpu


# ----------------------------------------------------------------------------
# Fused single-pass kernel: batch-tiled, full (C, HW) plane per block.
# ----------------------------------------------------------------------------
def _se_fused_kernel(x_ref, wrp_ref, wep_ref, o_ref, *, inv_hw):
    # x_ref:   (B_TILE, C, HW)   input dtype
    # wrp_ref: (C + 1, S) f32    rows [0:C] = w_reduce.T, row C = b_reduce
    # wep_ref: (S + 1, C) f32    rows [0:S] = w_expand.T, row S = b_expand
    # o_ref:   (B_TILE, C, HW)   input dtype
    x = x_ref[...]

    # Adaptive average pool to 1x1 == mean over the spatial lanes; accumulate
    # in f32 straight out of the reduce (no full-tile f32 copy).
    pooled = jnp.sum(x, axis=-1, dtype=jnp.float32) * inv_hw          # (B, C)

    wrp = wrp_ref[...]                                                # (C+1, S)
    wep = wep_ref[...]                                                # (S+1, C)
    c = wrp.shape[0] - 1
    s_dim = wep.shape[0] - 1

    # conv_reduce (1x1 conv on a 1x1 map == FC) + bias, batched over the tile.
    s = jnp.dot(pooled, wrp[:c], preferred_element_type=jnp.float32) + wrp[c:c + 1]
    s = s * jax.nn.sigmoid(s)                                         # SiLU
    # conv_expand + bias.
    e = jnp.dot(s, wep[:s_dim], preferred_element_type=jnp.float32) + wep[s_dim:s_dim + 1]
    scale = jax.nn.sigmoid(e)                                         # (B, C) f32

    # Broadcast multiply over spatial lanes, in the input dtype.
    o_ref[...] = x * scale.astype(x.dtype)[:, :, None]


# ----------------------------------------------------------------------------
# Spatial-tiled fallback kernels (used when one image's plane is too big for
# the fused path, e.g. very large H*W on v7x's 64 MiB VMEM).
# ----------------------------------------------------------------------------
def _se_pool_kernel(x_ref, o_ref, *, hw, t_hw):
    # x_ref: (1, C, T_HW); o_ref: (1, C, 1) f32 accumulator over spatial tiles.
    k = pl.program_id(1)

    @pl.when(k == 0)
    def _():
        o_ref[...] = jnp.zeros_like(o_ref)

    x = x_ref[...]
    lane = k * t_hw + jax.lax.broadcasted_iota(jnp.int32, x.shape, 2)
    x = jnp.where(lane < hw, x, jnp.zeros_like(x))     # mask ragged edge tile
    o_ref[...] += jnp.sum(x, axis=-1, keepdims=True, dtype=jnp.float32)


def _se_scale_kernel(x_ref, sc_ref, o_ref):
    # x_ref: (1, C, T_HW); sc_ref: (1, C, 1) f32; o_ref like x_ref.
    x = x_ref[...]
    o_ref[...] = x * sc_ref[...].astype(x.dtype)


# ----------------------------------------------------------------------------
# Wrapper
# ----------------------------------------------------------------------------
def _vmem_budget():
    try:
        cap = int(pltpu.get_tpu_info().vmem_capacity_bytes)
    except Exception:
        cap = 64 * 2**20          # conservative (v7x-sized) fallback
    ceiling = (3 * cap) // 4      # safe scoped-VMEM ceiling (below physical)
    # ~6.4 MiB tiles on v7x (64 MiB VMEM), ~12 MiB on v5e/v6e (128 MiB):
    # big enough to amortize the ~0.35us/step overhead at 0.8-3.2 TB/s.
    target_tile = max(4 * 2**20, min(12 * 2**20, cap // 10))
    return ceiling, target_tile


def squeeze_excite(x_nchw, w_reduce, b_reduce, w_expand, b_expand,
                   spatial_tile=None):
    """SqueezeExcite forward.

    x_nchw: (N, C, H, W).  Weights follow PyTorch Conv2d 1x1 shapes squeezed
    to 2D: w_reduce (S, C), w_expand (C, S); biases (S,), (C,).
    spatial_tile: optionally force the spatial-tiled fallback path.
    """
    N, C, H, W = x_nchw.shape
    S = w_reduce.shape[0]
    HW = H * W
    itemsize = x_nchw.dtype.itemsize

    x = x_nchw.reshape(N, C, HW)

    ceiling, target_tile = _vmem_budget()
    plane_bytes = C * HW * itemsize
    slack = 4 * 2**20

    cost = pl.CostEstimate(
        flops=int(4 * N * C * S + 2 * N * C * HW),
        transcendentals=int(2 * N * (S + C)),
        bytes_accessed=int(2 * N * C * HW * itemsize))

    can_fuse = (6 * plane_bytes + slack) <= ceiling
    use_spatial = (spatial_tile is not None or not can_fuse) and HW > 128

    if not use_spatial:
        # ---- Fused single-pass path ----------------------------------------
        # Pack weight + bias into one operand per FC (fewer tiny per-step DMAs).
        params_reduce = jnp.concatenate(
            [w_reduce.astype(jnp.float32).T,
             b_reduce.astype(jnp.float32)[None, :]], axis=0)          # (C+1, S)
        params_expand = jnp.concatenate(
            [w_expand.astype(jnp.float32).T,
             b_expand.astype(jnp.float32)[None, :]], axis=0)          # (S+1, C)

        b_tile = max(1, min(N,
                            target_tile // plane_bytes,
                            (ceiling - slack) // (6 * plane_bytes)))
        if N >= 2:
            b_tile = min(b_tile, (N + 1) // 2)   # grid_n >= 2 (v7x megacore)
        b_tile = int(b_tile)
        grid_n = pl.cdiv(N, b_tile)

        vmem_limit = int(min(ceiling,
                             max(32 * 2**20, 6 * b_tile * plane_bytes + slack)))

        kernel = functools.partial(_se_fused_kernel, inv_hw=1.0 / HW)
        out = pl.pallas_call(
            kernel,
            out_shape=jax.ShapeDtypeStruct((N, C, HW), x_nchw.dtype),
            grid_spec=pltpu.PrefetchScalarGridSpec(
                num_scalar_prefetch=0,
                grid=(grid_n,),
                in_specs=[
                    pl.BlockSpec((b_tile, C, HW), lambda n: (n, 0, 0)),
                    pl.BlockSpec((C + 1, S), lambda n: (0, 0)),
                    pl.BlockSpec((S + 1, C), lambda n: (0, 0)),
                ],
                out_specs=pl.BlockSpec((b_tile, C, HW), lambda n: (n, 0, 0)),
            ),
            compiler_params=pltpu.CompilerParams(
                dimension_semantics=("parallel",),
                vmem_limit_bytes=vmem_limit),
            cost_estimate=cost,
        )(x, params_reduce, params_expand)
        return out.reshape(N, C, H, W)

    # ---- Spatial-tiled two-pass fallback ------------------------------------
    if spatial_tile is not None:
        t_hw = max(128, ((int(spatial_tile) + 127) // 128) * 128)
    else:
        t_hw = max(128, (target_tile // (C * itemsize)) // 128 * 128)
    t_hw = int(min(t_hw, max(128, (HW // 128) * 128)))   # never exceed array
    grid_hw = pl.cdiv(HW, t_hw)
    chunk_bytes = C * t_hw * itemsize
    vmem_limit = int(min(ceiling, max(32 * 2**20, 5 * chunk_bytes + slack)))

    pool_cost = pl.CostEstimate(
        flops=int(N * C * HW), transcendentals=0,
        bytes_accessed=int(N * C * HW * itemsize + 4 * N * C))
    pooled_sum = pl.pallas_call(
        functools.partial(_se_pool_kernel, hw=HW, t_hw=t_hw),
        out_shape=jax.ShapeDtypeStruct((N, C, 1), jnp.float32),
        grid_spec=pltpu.PrefetchScalarGridSpec(
            num_scalar_prefetch=0,
            grid=(N, grid_hw),
            in_specs=[pl.BlockSpec((1, C, t_hw), lambda b, k: (b, 0, k))],
            out_specs=pl.BlockSpec((1, C, 1), lambda b, k: (b, 0, 0)),
        ),
        compiler_params=pltpu.CompilerParams(
            dimension_semantics=("parallel", "arbitrary"),
            vmem_limit_bytes=vmem_limit),
        cost_estimate=pool_cost,
    )(x)

    # Tiny (N, C)-sized FCs between the two memory-bound passes: plain JAX.
    pooled = pooled_sum[..., 0] * (1.0 / HW)                          # (N, C)
    s = pooled @ w_reduce.astype(jnp.float32).T + b_reduce.astype(jnp.float32)
    s = s * jax.nn.sigmoid(s)
    e = s @ w_expand.astype(jnp.float32).T + b_expand.astype(jnp.float32)
    scale = jax.nn.sigmoid(e)[..., None]                              # (N, C, 1)

    mul_cost = pl.CostEstimate(
        flops=int(N * C * HW), transcendentals=0,
        bytes_accessed=int(2 * N * C * HW * itemsize))
    out = pl.pallas_call(
        _se_scale_kernel,
        out_shape=jax.ShapeDtypeStruct((N, C, HW), x_nchw.dtype),
        grid_spec=pltpu.PrefetchScalarGridSpec(
            num_scalar_prefetch=0,
            grid=(N, grid_hw),
            in_specs=[pl.BlockSpec((1, C, t_hw), lambda b, k: (b, 0, k)),
                      pl.BlockSpec((1, C, 1), lambda b, k: (b, 0, 0))],
            out_specs=pl.BlockSpec((1, C, t_hw), lambda b, k: (b, 0, k)),
        ),
        compiler_params=pltpu.CompilerParams(
            dimension_semantics=("parallel", "parallel"),
            vmem_limit_bytes=vmem_limit),
        cost_estimate=mul_cost,
    )(x, scale)
    return out.reshape(N, C, H, W)


def reference_se(x, w_reduce, b_reduce, w_expand, b_expand):
    # Pure-JAX reference mirroring the PyTorch forward.
    pooled = jnp.mean(x, axis=(2, 3), keepdims=True)                  # (N,C,1,1)
    s = jnp.einsum('sc,ncij->nsij', w_reduce, pooled) + b_reduce[None, :, None, None]
    s = s * jax.nn.sigmoid(s)
    e = jnp.einsum('cs,nsij->ncij', w_expand, s) + b_expand[None, :, None, None]
    scale = jax.nn.sigmoid(e)
    return scale * x


if __name__ == "__main__":
    # Module config: SqueezeExcite(input_channels=16, expand_channels=8)
    #   squeeze_channels = int(16 * 0.25) = 4; the forward input has
    #   expand_channels channels (conv_reduce: Conv2d(expand, squeeze, 1)).
    input_channels = 16
    expand_channels = 8
    se_ratio = 0.25
    squeeze_channels = int(input_channels * se_ratio)

    N, C, H, W = 2, expand_channels, 16, 16
    S = squeeze_channels

    key = jax.random.PRNGKey(0)
    k_x, k_wr, k_br, k_we, k_be = jax.random.split(key, 5)

    x = jax.random.normal(k_x, (N, C, H, W), dtype=jnp.float32)
    # Conv2d(expand, squeeze, 1).weight has shape (S, C, 1, 1) -> (S, C)
    w_reduce = jax.random.normal(k_wr, (S, C), dtype=jnp.float32) * 0.1
    b_reduce = jax.random.normal(k_br, (S,), dtype=jnp.float32) * 0.1
    # Conv2d(squeeze, expand, 1).weight has shape (C, S, 1, 1) -> (C, S)
    w_expand = jax.random.normal(k_we, (C, S), dtype=jnp.float32) * 0.1
    b_expand = jax.random.normal(k_be, (C,), dtype=jnp.float32) * 0.1

    # Primary run (fused path).
    out = jax.block_until_ready(
        squeeze_excite(x, w_reduce, b_reduce, w_expand, b_expand))
    ref = reference_se(x, w_reduce, b_reduce, w_expand, b_expand)
    assert out.shape == (N, C, H, W)
    # Tolerance covers MXU-vs-XLA matmul rounding on the tiny FCs.
    assert jnp.allclose(out, ref, atol=1e-3, rtol=1e-3), "fused path mismatch"

    # Realistic SE spatial size (HW=49, not a multiple of 128) + odd batch:
    # exercises masked lane stores and the ragged batch-edge block.
    x2 = jax.random.normal(jax.random.PRNGKey(1), (3, C, 7, 7), dtype=jnp.float32)
    out2 = jax.block_until_ready(
        squeeze_excite(x2, w_reduce, b_reduce, w_expand, b_expand))
    ref2 = reference_se(x2, w_reduce, b_reduce, w_expand, b_expand)
    assert jnp.allclose(out2, ref2, atol=1e-3, rtol=1e-3), "ragged path mismatch"

    # Force the spatial-tiled fallback at a small shape with a ragged spatial
    # edge (HW=225, tile=128) to validate the large-plane path.
    x3 = jax.random.normal(jax.random.PRNGKey(2), (2, C, 15, 15), dtype=jnp.float32)
    out3 = jax.block_until_ready(
        squeeze_excite(x3, w_reduce, b_reduce, w_expand, b_expand,
                       spatial_tile=128))
    ref3 = reference_se(x3, w_reduce, b_reduce, w_expand, b_expand)
    assert jnp.allclose(out3, ref3, atol=1e-3, rtol=1e-3), "spatial path mismatch"

    print("KERNEL_OK")
</pallas_src>

<mosaic_0001>
module attributes {stable_mosaic.version = 11 : i64} {
  func.func @_se_fused_kernel(%arg0: i32, %arg1: memref<1x8x256xf32, #tpu.memory_space<vmem>>, %arg2: memref<9x4xf32, #tpu.memory_space<vmem>>, %arg3: memref<5x8xf32, #tpu.memory_space<vmem>>, %arg4: memref<1x8x256xf32, #tpu.memory_space<vmem>>) attributes {dimension_semantics = [#tpu.dimension_semantics<parallel>], iteration_bounds = array<i64: 2>, scalar_prefetch = 0 : i64, scratch_operands = 0 : i64, tpu.core_type = #tpu.core_type<tc>, window_params = [{transform_indices = @transform_0, window_bounds = array<i64: 1, 8, 256>}, {pipeline_mode = #tpu.pipeline_mode<synchronous>, transform_indices = @transform_1, window_bounds = array<i64: 9, 4>}, {pipeline_mode = #tpu.pipeline_mode<synchronous>, transform_indices = @transform_2, window_bounds = array<i64: 5, 8>}, {transform_indices = @transform_3, window_bounds = array<i64: 1, 8, 256>}]} {
    %c0 = arith.constant 0 : index
    %c0_0 = arith.constant 0 : index
    %c0_1 = arith.constant 0 : index
    %0 = vector.load %arg1[%c0, %c0_0, %c0_1] : memref<1x8x256xf32, #tpu.memory_space<vmem>>, vector<1x8x256xf32>
    %cst = arith.constant dense<0.000000e+00> : vector<1x8xf32>
    %1 = vector.multi_reduction <add>, %0, %cst [2] : vector<1x8x256xf32> to vector<1x8xf32>
    %cst_2 = arith.constant 3.906250e-03 : f32
    %2 = vector.broadcast %cst_2 : f32 to vector<1x8xf32>
    %3 = arith.mulf %1, %2 : vector<1x8xf32>
    %c0_3 = arith.constant 0 : index
    %c0_4 = arith.constant 0 : index
    %4 = vector.load %arg2[%c0_3, %c0_4] : memref<9x4xf32, #tpu.memory_space<vmem>>, vector<9x4xf32>
    %c0_5 = arith.constant 0 : index
    %c0_6 = arith.constant 0 : index
    %5 = vector.load %arg3[%c0_5, %c0_6] : memref<5x8xf32, #tpu.memory_space<vmem>>, vector<5x8xf32>
    %6 = vector.extract_strided_slice %4 {offsets = [0, 0], sizes = [8, 4], strides = [1, 1]} : vector<9x4xf32> to vector<8x4xf32>
    %cst_7 = arith.constant dense<0.000000e+00> : vector<1x4xf32>
    %7 = tpu.matmul %3, %6, %cst_7 {dimension_numbers = #tpu.dot_dimension_numbers<[1], [0], [0], [1], [0, 0, 1, 1], [], []>} : vector<1x8xf32>, vector<8x4xf32>, vector<1x4xf32> -> vector<1x4xf32>
    %8 = vector.extract_strided_slice %4 {offsets = [8, 0], sizes = [1, 4], strides = [1, 1]} : vector<9x4xf32> to vector<1x4xf32>
    %9 = arith.addf %7, %8 : vector<1x4xf32>
    %10 = arith.negf %9 : vector<1x4xf32>
    %11 = math.exp %10 : vector<1x4xf32>
    %cst_8 = arith.constant 1.000000e+00 : f32
    %12 = vector.broadcast %cst_8 : f32 to vector<1x4xf32>
    %13 = arith.addf %12, %11 : vector<1x4xf32>
    %14 = arith.divf %12, %13 : vector<1x4xf32>
    %15 = arith.mulf %9, %14 : vector<1x4xf32>
    %16 = vector.extract_strided_slice %5 {offsets = [0, 0], sizes = [4, 8], strides = [1, 1]} : vector<5x8xf32> to vector<4x8xf32>
    %cst_9 = arith.constant dense<0.000000e+00> : vector<1x8xf32>
    %17 = tpu.matmul %15, %16, %cst_9 {dimension_numbers = #tpu.dot_dimension_numbers<[1], [0], [0], [1], [0, 0, 1, 1], [], []>} : vector<1x4xf32>, vector<4x8xf32>, vector<1x8xf32> -> vector<1x8xf32>
    %18 = vector.extract_strided_slice %5 {offsets = [4, 0], sizes = [1, 8], strides = [1, 1]} : vector<5x8xf32> to vector<1x8xf32>
    %19 = arith.addf %17, %18 : vector<1x8xf32>
    %20 = arith.negf %19 : vector<1x8xf32>
    %21 = math.exp %20 : vector<1x8xf32>
    %cst_10 = arith.constant 1.000000e+00 : f32
    %22 = vector.broadcast %cst_10 : f32 to vector<1x8xf32>
    %23 = arith.addf %22, %21 : vector<1x8xf32>
    %24 = arith.divf %22, %23 : vector<1x8xf32>
    %25 = vector.shape_cast %24 : vector<1x8xf32> to vector<1x8x1xf32>
    %26 = vector.broadcast %25 : vector<1x8x1xf32> to vector<1x8x256xf32>
    %27 = arith.mulf %0, %26 : vector<1x8x256xf32>
    %c0_11 = arith.constant 0 : index
    %c0_12 = arith.constant 0 : index
    %c0_13 = arith.constant 0 : index
    %28 = vector.load %arg4[%c0_11, %c0_12, %c0_13] : memref<1x8x256xf32, #tpu.memory_space<vmem>>, vector<1x8x256xf32>
    tpu.vector_store %arg4[%c0_11, %c0_12, %c0_13], %27 {strides = array<i32>} : memref<1x8x256xf32, #tpu.memory_space<vmem>>, vector<1x8x256xf32>,
    return
  }
  func.func @transform_0(%arg0: i32) -> (i32, i32, i32) {
    %c0_i32 = arith.constant 0 : i32
    %c0_i32_0 = arith.constant 0 : i32
    %c0_i32_1 = arith.constant 0 : i32
    return %arg0, %c0_i32, %c0_i32_0 : i32, i32, i32
  }
  func.func @transform_1(%arg0: i32) -> (i32, i32) {
    %c0_i32 = arith.constant 0 : i32
    %c0_i32_0 = arith.constant 0 : i32
    %c0_i32_1 = arith.constant 0 : i32
    return %c0_i32, %c0_i32_0 : i32, i32
  }
  func.func @transform_2(%arg0: i32) -> (i32, i32) {
    %c0_i32 = arith.constant 0 : i32
    %c0_i32_0 = arith.constant 0 : i32
    %c0_i32_1 = arith.constant 0 : i32
    return %c0_i32, %c0_i32_0 : i32, i32
  }
  func.func @transform_3(%arg0: i32) -> (i32, i32, i32) {
    %c0_i32 = arith.constant 0 : i32
    %c0_i32_0 = arith.constant 0 : i32
    %c0_i32_1 = arith.constant 0 : i32
    return %arg0, %c0_i32, %c0_i32_0 : i32, i32, i32
  }
}

</mosaic_0001>

<llo_original>
// kernel: tpu_custom_call.1
$region0: #{tpu_custom_call.1}
  #allocation0 [shape = 'u32[]', space=smem, size = 0x4, offset = 0x4, fixed_abs, tag = 'smem constant byte address 0x4 - core index']
  #allocation1 [shape = 'u32[144,128]{1,0:T(1,128)}', space=vmem, size = 0x12000, scoped, tag = 'internal scratch']
  %s0 = inlined_call_operand.hbm [shape: f32[2,8,256], index: 0, kind: input, shape index: {}]
  %s1 = inlined_call_operand.vmem [shape: f32[9,4], index: 1, kind: input, shape index: {}]
  %s2 = inlined_call_operand.vmem [shape: f32[5,8], index: 2, kind: input, shape index: {}]
  %s3 = inlined_call_operand.hbm [shape: f32[2,8,256], index: 3, kind: output, shape index: {}]
  %s4 = sld [smem:[#allocation0]]
  $region49: #{tpu_custom_call.1} parent=0
    _
  %s6 = ssub.s32 1, %s4
  %s7 = scalar_select 0, %s6, %s4
  $region1: #{tpu_custom_call.1} parent=0
    #allocation2 [shape = 'u8[16384]{0}', space=vmem, size = 0x4000, scoped, tag = 'input window, operand 0']
    #allocation3 [shape = 's32[2]{0}', space=sflag, size = 0x8, scoped, tag = 'scoped memory for tpu_custom_call.1']
    #allocation4 [shape = 's32[2]{0}', space=sflag, size = 0x8, scoped, tag = 'scoped memory for tpu_custom_call.1']
    #allocation5 [shape = 'u8[16384]{0}', space=vmem, size = 0x4000, scoped, tag = 'output window, operand 0']
    %8 = vsyncpa [#allocation3], 0
    %s9 = scalar_lea.sflag [#allocation3], 1
    %10 = vsyncpa %s9, 0
    %11 = vsyncpa [#allocation4], 0
    %s12 = scalar_lea.sflag [#allocation4], 1
    %13 = vsyncpa %s12, 0
    loop: start=0, step=1, limit=4
    $region2: #{tpu_custom_call.1} parent=1 // loop_pre_header
      _
    $region3: #{tpu_custom_call.1} parent=1 // loop_header
      %s15 = sphi 0, %s19
      %p16 = scmp.ge.s32.totalorder %s15, 4
      %s25 = sphi 0, %s27
      %s28 = sphi 0, %s25
      %s29 = sphi 0, %s28
      %s45 = sphi 0, %s29
      %s49 = sphi 0, %s49
      %s51 = sphi 0, %s49
      %s52 = sphi 0, %s51
      %s66 = sphi 0, %s52
      %s70 = sphi 0, %s70
      %s72 = sphi 0, %s70
      %s73 = sphi 0, %s72
      %s87 = sphi 0, %s73
      %s93 = sphi 0, %s95
      %s96 = sphi 0, %s93
      %s97 = sphi 0, %s96
      %s113 = sphi 0, %s97
    $region4: #{tpu_custom_call.1} parent=1 // loop_header_branch
      %18 = sbr.rel (%p16) target = $region8
    $region5: #{tpu_custom_call.1} parent=1 // loop_body
      %s20 = ssub.s32 %s15, 1
      %s21 = ssub.s32 %s15, 2
      %s22 = sadd.s32 %s15, 1
      %s23 = ssub.s32 %s15, %s22
      %p24 = scmp.eq.s32.totalorder %s23, 0
      %s26 = sadd.s32 %s25, 1
      %s27 = scalar_select %p24, %s25, %s26
      %p30 = pneg %p24
      %p31 = scmp.eq.s32.totalorder %s15, 1
      %p32 = por %p30, %p31
      %p33 = scmp.ne.s32.totalorder %s25, %s28
      %p34 = scmp.eq.s32.totalorder %s15, 0
      %p35 = por %p33, %p34
      %p36 = scmp.ne.s32.totalorder %s25, %s28
      %p37 = scmp.eq.s32.totalorder %s20, 1
      %p38 = por %p36, %p37
      %p39 = scmp.ne.s32.totalorder %s28, %s29
      %p40 = scmp.eq.s32.totalorder %s20, 0
      %p41 = por %p39, %p40
      %p42 = scmp.ne.s32.totalorder %s28, %s29
      %p43 = scmp.eq.s32.totalorder %s21, 1
      %p44 = por %p42, %p43
      %p46 = scmp.ne.s32.totalorder %s29, %s45
      %p47 = scmp.eq.s32.totalorder %s21, 0
      %p48 = por %p46, %p47
      %s50 = sadd.s32 %s49, 1
      %p53 = scmp.eq.s32.totalorder %s15, 1
      %p54 = scmp.ne.s32.totalorder %s49, %s51
      %p55 = scmp.eq.s32.totalorder %s15, 0
      %p56 = por %p54, %p55
      %p57 = scmp.ne.s32.totalorder %s49, %s51
      %p58 = scmp.eq.s32.totalorder %s20, 1
      %p59 = por %p57, %p58
      %p60 = scmp.ne.s32.totalorder %s51, %s52
      %p61 = scmp.eq.s32.totalorder %s20, 0
      %p62 = por %p60, %p61
      %p63 = scmp.ne.s32.totalorder %s51, %s52
      %p64 = scmp.eq.s32.totalorder %s21, 1
      %p65 = por %p63, %p64
      %p67 = scmp.ne.s32.totalorder %s52, %s66
      %p68 = scmp.eq.s32.totalorder %s21, 0
      %p69 = por %p67, %p68
      %s71 = sadd.s32 %s70, 1
      %p74 = scmp.eq.s32.totalorder %s15, 1
      %p75 = scmp.ne.s32.totalorder %s70, %s72
      %p76 = scmp.eq.s32.totalorder %s15, 0
      %p77 = por %p75, %p76
      %p78 = scmp.ne.s32.totalorder %s70, %s72
      %p79 = scmp.eq.s32.totalorder %s20, 1
      %p80 = por %p78, %p79
      %p81 = scmp.ne.s32.totalorder %s72, %s73
      %p82 = scmp.eq.s32.totalorder %s20, 0
      %p83 = por %p81, %p82
      %p84 = scmp.ne.s32.totalorder %s72, %s73
      %p85 = scmp.eq.s32.totalorder %s21, 1
      %p86 = por %p84, %p85
      %p88 = scmp.ne.s32.totalorder %s73, %s87
      %p89 = scmp.eq.s32.totalorder %s21, 0
      %p90 = por %p88, %p89
      %s91 = ssub.s32 %s15, %s22
      %p92 = scmp.eq.s32.totalorder %s91, 0
      %s94 = sadd.s32 %s93, 1
      %s95 = scalar_select %p92, %s93, %s94
      %p98 = pneg %p92
      %p99 = scmp.eq.s32.totalorder %s15, 1
      %p100 = por %p98, %p99
      %p101 = scmp.ne.s32.totalorder %s93, %s96
      %p102 = scmp.eq.s32.totalorder %s15, 0
      %p103 = por %p101, %p102
      %p104 = scmp.ne.s32.totalorder %s93, %s96
      %p105 = scmp.eq.s32.totalorder %s20, 1
      %p106 = por %p104, %p105
      %p107 = scmp.ne.s32.totalorder %s96, %s97
      %p108 = scmp.eq.s32.totalorder %s20, 0
      %p109 = por %p107, %p108
      %p110 = scmp.ne.s32.totalorder %s96, %s97
      %p111 = scmp.eq.s32.totalorder %s21, 1
      %p112 = por %p110, %p111
      %p114 = scmp.ne.s32.totalorder %s97, %s113
      %p115 = scmp.eq.s32.totalorder %s21, 0
      %p116 = por %p114, %p115
      %p117 = scmp.le.s32.totalorder 1, %s15
      %p118 = scmp.lt.s32.totalorder %s15, 3
      %p119 = pnand %p117, %p118
      %p120 = pneg %p119
      // Predicated region
      $region9: #{tpu_custom_call.1} parent=5 // pred_check
        _
      $region10: #{tpu_custom_call.1} parent=5 // pred_check_branch
        %122 = sbr.rel (%p119) target = $region12
      $region11: #{tpu_custom_call.1} parent=5 // pred_region
        %s123 = ssub.s32 %s15, 1
        // Predicated region
        $region13: #{tpu_custom_call.1} parent=11 // pred_check
          %p124 = pneg %p62
        $region14: #{tpu_custom_call.1} parent=11 // pred_check_branch
          %126 = sbr.rel (%p124) target = $region16
        $region15: #{tpu_custom_call.1} parent=11 // pred_region
          _
        $region16: #{tpu_custom_call.1} parent=11 // pred_fallthru
          _
        // Predicated region
        $region17: #{tpu_custom_call.1} parent=11 // pred_check
          %p127 = pneg %p83
        $region18: #{tpu_custom_call.1} parent=11 // pred_check_branch
          %129 = sbr.rel (%p127) target = $region20
        $region19: #{tpu_custom_call.1} parent=11 // pred_region
          _
        $region20: #{tpu_custom_call.1} parent=11 // pred_fallthru
          _
      $region12: #{tpu_custom_call.1} parent=5 // pred_fallthru
        _
      %p130 = scmp.lt.s32.totalorder %s15, 2
      // Predicated region
      $region21: #{tpu_custom_call.1} parent=5 // pred_check
        %p131 = pneg %p130
      $region22: #{tpu_custom_call.1} parent=5 // pred_check_branch
        %133 = sbr.rel (%p131) target = $region24
      $region23: #{tpu_custom_call.1} parent=5 // pred_region
        // Predicated region
        $region25: #{tpu_custom_call.1} parent=23 // pred_check
          %p134 = pneg %p35
        $region26: #{tpu_custom_call.1} parent=23 // pred_check_branch
          %136 = sbr.rel (%p134) target = $region28
        $region27: #{tpu_custom_call.1} parent=23 // pred_region
          %s137 = sand.u32 %s25, 1
          %s138 = scalar_lea.sflag [#allocation3], %s137
          %s139 = sand.u32 %s25, 1
          %s140 = smul.addr %s139, 16
          %s141 = scalar_lea.vmem [#allocation2], %s140
          %s143 = ssub.s32 256, 256
          %144 = vsyncadd %s138, %s143
          %s145 = smul.addr %s15, 2
          %s146 = smul.addr %s145, 128
          %s147 = scalar_lea.hbm %s0, %s146
          %s149 = sshll.u32 %s141, 4
          %s150 = int_to_ptr.vmem [resolvable:$true] %s149
          %152 = dma.hbm_to_vmem [thread:$0]  %s147, 256, %s150, %s138
        $region28: #{tpu_custom_call.1} parent=23 // pred_fallthru
          _
      $region24: #{tpu_custom_call.1} parent=5 // pred_fallthru
        _
      %p153 = scmp.le.s32.totalorder 1, %s15
      %p154 = scmp.lt.s32.totalorder %s15, 3
      %p155 = pnand %p153, %p154
      %p156 = pneg %p155
      // Predicated region
      $region29: #{tpu_custom_call.1} parent=5 // pred_check
        _
      $region30: #{tpu_custom_call.1} parent=5 // pred_check_branch
        %158 = sbr.rel (%p155) target = $region32
      $region31: #{tpu_custom_call.1} parent=5 // pred_region
        %s159 = ssub.s32 %s15, 1
        %s160 = sand.u32 %s28, 1
        %s161 = scalar_lea.sflag [#allocation3], %s160
        %s162 = sand.u32 %s28, 1
        %s163 = smul.addr %s162, 16
        %s164 = scalar_lea.vmem [#allocation2], %s163
        // Predicated region
        $region33: #{tpu_custom_call.1} parent=31 // pred_check
          %p165 = pneg %p41
        $region34: #{tpu_custom_call.1} parent=31 // pred_check_branch
          %167 = sbr.rel (%p165) target = $region36
        $region35: #{tpu_custom_call.1} parent=31 // pred_region
          %168 = dma.done %s161, 256
        $region36: #{tpu_custom_call.1} parent=31 // pred_fallthru
          _
        %s169 = sand.u32 %s28, 1
        %s170 = scalar_lea.sflag [#allocation3], %s169
        %s171 = sand.u32 %s28, 1
        %s172 = smul.addr %s171, 16
        %s173 = scalar_lea.vmem [#allocation2], %s172
        %p174 = pneg %p41
        %p175 = pneg %p38
        %p176 = pneg %p62
        %p177 = pneg %p59
        %p178 = pneg %p83
        %p179 = pneg %p80
        %p180 = pneg %p109
        %p181 = pneg %p106
        %s182 = sand.u32 %s96, 1
        %s183 = scalar_lea.sflag [#allocation4], %s182
        %s184 = sand.u32 %s96, 1
        %s185 = smul.addr %s184, 16
        %s186 = scalar_lea.vmem [#allocation5], %s185
        %v187 = vld [vmem:[%s164] sm:$0xff]
        %v188 = vld [vmem:[%s164 + $0x8] sm:$0xff]
        %v189 = vadd.f32 %v187, %v188
        %190 = vadd.xlane.f32.xlu0 %v189
        %v191 = vpop.xlane.xlu0 %190
        %v192 = vmul.f32 %v191, 0.00390625
        %v193 = vld [vmem:[%s1] sm:$0xff]
        %v194 = vld [vmem:[%s1 + $0x8] sm:$0x1]
        %v195 = vld [vmem:[%s2] sm:$0x1f]
        %v197 = vlaneseq
        %v198 = vand.u32 %v197, 127
        %v199 = vlaneseq
        %v200 = vshrl.u32 %v199, 7
        %v201 = vsub.s32 %v198, %v200
        %v202 = vrot.slane %v192, %v201
        %vm203 = vcmask 64512
        %v204 = vsel %vm203, %v202, 0
        %206 = vmatprep.subr.mxu0 0.0
        %207 = vmatpush1.msra.mxu0 %v193
        %208 = vmatprep.subr.mxu0 0.0
        %209 = vmatpush1.msra.mxu0 0.0
        %210 = vmatprep.subr.mxu0 0.0
        %211 = vmatpush1.msra.mxu0 0.0
        %212 = vmatprep.subr.mxu0 0.0
        %213 = vmatpush1.msra.mxu0 0.0
        %214 = vmatprep.subr.mxu0 0.0
        %215 = vmatpush1.msra.mxu0 0.0
        %216 = vmatprep.subr.mxu0 0.0
        %217 = vmatpush1.msra.mxu0 0.0
        %218 = vmatprep.subr.mxu0 0.0
        %219 = vmatpush1.msra.mxu0 0.0
        %220 = vmatprep.subr.mxu0 0.0
        %221 = vmatpush1.msra.mxu0 0.0
        %222 = vmatprep.subr.mxu0 0.0
        %223 = vmatpush1.msra.mxu0 0.0
        %224 = vmatprep.subr.mxu0 0.0
        %225 = vmatpush1.msra.mxu0 0.0
        %226 = vmatprep.subr.mxu0 0.0
        %227 = vmatpush1.msra.mxu0 0.0
        %228 = vmatprep.subr.mxu0 0.0
        %229 = vmatpush1.msra.mxu0 0.0
        %230 = vmatprep.subr.mxu0 0.0
        %231 = vmatpush1.msra.mxu0 0.0
        %232 = vmatprep.subr.mxu0 0.0
        %233 = vmatpush1.msra.mxu0 0.0
        %234 = vmatprep.subr.mxu0 0.0
        %235 = vmatpush1.msra.mxu0 0.0
        %236 = vmatprep.subr.mxu0 0.0
        %237 = vmatpush1.msra.mxu0 0.0
        %238 = vmatprep.subr.mxu0 0.0
        %239 = vmatpush1.msra.mxu0 0.0
        %240 = vmatprep.subr.mxu0 0.0
        %241 = vmatpush1.msra.mxu0 0.0
        %242 = vmatprep.subr.mxu0 0.0
        %243 = vmatpush1.msra.mxu0 0.0
        %244 = vmatprep.subr.mxu0 0.0
        %245 = vmatpush1.msra.mxu0 0.0
        %246 = vmatprep.subr.mxu0 0.0
        %247 = vmatpush1.msra.mxu0 0.0
        %248 = vmatprep.subr.mxu0 0.0
        %249 = vmatpush1.msra.mxu0 0.0
        %250 = vmatprep.subr.mxu0 0.0
        %251 = vmatpush1.msra.mxu0 0.0
        %252 = vmatprep.subr.mxu0 0.0
        %253 = vmatpush1.msra.mxu0 0.0
        %254 = vmatprep.subr.mxu0 0.0
        %255 = vmatpush1.msra.mxu0 0.0
        %256 = vmatprep.subr.mxu0 0.0
        %257 = vmatpush1.msra.mxu0 0.0
        %258 = vmatprep.subr.mxu0 0.0
        %259 = vmatpush1.msra.mxu0 0.0
        %260 = vmatprep.subr.mxu0 0.0
        %261 = vmatpush1.msra.mxu0 0.0
        %262 = vmatprep.subr.mxu0 0.0
        %263 = vmatpush1.msra.mxu0 0.0
        %264 = vmatprep.subr.mxu0 0.0
        %265 = vmatpush1.msra.mxu0 0.0
        %266 = vmatprep.subr.mxu0 0.0
        %267 = vmatpush1.msra.mxu0 0.0
        %268 = vmatprep.subr.mxu0 0.0
        %269 = vmatpush1.msra.mxu0 0.0
        %270 = vmatprep.mubr.f32.mxu0 0.0
        %271 = vmatmul.mubr.f32.gmra.mrb[0].mxu0 %v204
        %v272 = vpop.f32.mrb[0].mxu0
        %v273 = vadd.f32 %v194, %v272
        %v274 = vpop.f32.mrb[0].mxu0
        %275 = vdwg.mxu0
        %v276 = vxor.u32 %v273, 2147483648
        %v277 = vmul.f32 %v276, 1.442695
        %v278 = vpow.pop %v277
        %v279 = vadd.f32 %v278, 1.0
        %v280 = vrcp.pop %v279
        %v281 = vmul.f32 1.0, %v280
        %v282 = vmul.f32 %v273, %v281
        %v284 = vrot.slane %v195, 4
        %vm286 = vcmask 31744
        %v288 = vsel %vm286, %v282, 0
        %vm290 = vcmask 1043456
        %v291 = vsel %vm290, %v195, 0
        %293 = vmatprep.subr.mxu0 0.0
        %294 = vmatpush1.msra.mxu0 %v291
        %295 = vmatprep.subr.mxu0 0.0
        %296 = vmatpush1.msra.mxu0 0.0
        %297 = vmatprep.subr.mxu0 0.0
        %298 = vmatpush1.msra.mxu0 0.0
        %299 = vmatprep.subr.mxu0 0.0
        %300 = vmatpush1.msra.mxu0 0.0
        %301 = vmatprep.subr.mxu0 0.0
        %302 = vmatpush1.msra.mxu0 0.0
        %303 = vmatprep.subr.mxu0 0.0
        %304 = vmatpush1.msra.mxu0 0.0
        %305 = vmatprep.subr.mxu0 0.0
        %306 = vmatpush1.msra.mxu0 0.0
        %307 = vmatprep.subr.mxu0 0.0
        %308 = vmatpush1.msra.mxu0 0.0
        %309 = vmatprep.subr.mxu0 0.0
        %310 = vmatpush1.msra.mxu0 0.0
        %311 = vmatprep.subr.mxu0 0.0
        %312 = vmatpush1.msra.mxu0 0.0
        %313 = vmatprep.subr.mxu0 0.0
        %314 = vmatpush1.msra.mxu0 0.0
        %315 = vmatprep.subr.mxu0 0.0
        %316 = vmatpush1.msra.mxu0 0.0
        %317 = vmatprep.subr.mxu0 0.0
        %318 = vmatpush1.msra.mxu0 0.0
        %319 = vmatprep.subr.mxu0 0.0
        %320 = vmatpush1.msra.mxu0 0.0
        %321 = vmatprep.subr.mxu0 0.0
        %322 = vmatpush1.msra.mxu0 0.0
        %323 = vmatprep.subr.mxu0 0.0
        %324 = vmatpush1.msra.mxu0 0.0
        %325 = vmatprep.subr.mxu0 0.0
        %326 = vmatpush1.msra.mxu0 0.0
        %327 = vmatprep.subr.mxu0 0.0
        %328 = vmatpush1.msra.mxu0 0.0
        %329 = vmatprep.subr.mxu0 0.0
        %330 = vmatpush1.msra.mxu0 0.0
        %331 = vmatprep.subr.mxu0 0.0
        %332 = vmatpush1.msra.mxu0 0.0
        %333 = vmatprep.subr.mxu0 0.0
        %334 = vmatpush1.msra.mxu0 0.0
        %335 = vmatprep.subr.mxu0 0.0
        %336 = vmatpush1.msra.mxu0 0.0
        %337 = vmatprep.subr.mxu0 0.0
        %338 = vmatpush1.msra.mxu0 0.0
        %339 = vmatprep.subr.mxu0 0.0
        %340 = vmatpush1.msra.mxu0 0.0
        %341 = vmatprep.subr.mxu0 0.0
        %342 = vmatpush1.msra.mxu0 0.0
        %343 = vmatprep.subr.mxu0 0.0
        %344 = vmatpush1.msra.mxu0 0.0
        %345 = vmatprep.subr.mxu0 0.0
        %346 = vmatpush1.msra.mxu0 0.0
        %347 = vmatprep.subr.mxu0 0.0
        %348 = vmatpush1.msra.mxu0 0.0
        %349 = vmatprep.subr.mxu0 0.0
        %350 = vmatpush1.msra.mxu0 0.0
        %351 = vmatprep.subr.mxu0 0.0
        %352 = vmatpush1.msra.mxu0 0.0
        %353 = vmatprep.subr.mxu0 0.0
        %354 = vmatpush1.msra.mxu0 0.0
        %355 = vmatprep.subr.mxu0 0.0
        %356 = vmatpush1.msra.mxu0 0.0
        %357 = vmatprep.mubr.f32.mxu0 0.0
        %358 = vmatmul.mubr.f32.gmra.mrb[0].mxu0 %v288
        %v359 = vpop.f32.mrb[0].mxu0
        %v360 = vadd.f32 %v284, %v359
        %v361 = vpop.f32.mrb[0].mxu0
        %362 = vdwg.mxu0
        %v363 = vxor.u32 %v360, 2147483648
        %v364 = vmul.f32 %v363, 1.442695
        %v365 = vpow.pop %v364
        %v366 = vadd.f32 %v365, 1.0
        %v367 = vrcp.pop %v366
        %v368 = vmul.f32 1.0, %v367
        %v369 = vlaneseq
        %v370 = vshrl.u32 %v369, 7
        %v371 = vsub.s32 0, %v370
        %v372 = vrot.slane %v368, %v371
        %374 = vbcast.lane.b32.xlu0 %v372, 256
        %v375 = vpop.permute.xlu0 %374
        %v376 = vmul.f32 %v187, %v375
        %v377 = vmul.f32 %v188, %v375
        %378 = vst [vmem:[%s186] sm:$0xff] %v376
        %379 = vst [vmem:[%s186 + $0x8] sm:$0xff] %v377
        %s380 = sand.u32 %s96, 1
        %s381 = scalar_lea.sflag [#allocation4], %s380
        %s382 = sand.u32 %s96, 1
        %s383 = smul.addr %s382, 16
        %s384 = scalar_lea.vmem [#allocation5], %s383
        // Predicated region
        $region37: #{tpu_custom_call.1} parent=31 // pred_check
          %p385 = pneg %p106
        $region38: #{tpu_custom_call.1} parent=31 // pred_check_branch
          %387 = sbr.rel (%p385) target = $region40
        $region39: #{tpu_custom_call.1} parent=31 // pred_region
          %s389 = ssub.s32 256, 256
          %390 = vsyncadd %s381, %s389
          %s391 = smul.addr %s20, 2
          %s392 = smul.addr %s391, 128
          %s393 = scalar_lea.hbm %s3, %s392
          %s395 = sshll.u32 %s384, 4
          %s396 = int_to_ptr.vmem [resolvable:$true] %s395
          %398 = dma.vmem_to_hbm [thread:$0]  %s396, 256, %s393, %s381
        $region40: #{tpu_custom_call.1} parent=31 // pred_fallthru
          _
      $region32: #{tpu_custom_call.1} parent=5 // pred_fallthru
        _
      %p399 = scmp.le.s32.totalorder 2, %s15
      // Predicated region
      $region41: #{tpu_custom_call.1} parent=5 // pred_check
        %p400 = pneg %p399
      $region42: #{tpu_custom_call.1} parent=5 // pred_check_branch
        %402 = sbr.rel (%p400) target = $region44
      $region43: #{tpu_custom_call.1} parent=5 // pred_region
        %s403 = ssub.s32 %s15, 2
        // Predicated region
        $region45: #{tpu_custom_call.1} parent=43 // pred_check
          %p404 = pneg %p112
        $region46: #{tpu_custom_call.1} parent=43 // pred_check_branch
          %406 = sbr.rel (%p404) target = $region48
        $region47: #{tpu_custom_call.1} parent=43 // pred_region
          %s407 = sand.u32 %s97, 1
          %s408 = scalar_lea.sflag [#allocation4], %s407
          %s409 = sand.u32 %s97, 1
          %s410 = smul.addr %s409, 16
          %s411 = scalar_lea.vmem [#allocation5], %s410
          %412 = dma.done %s408, 256
        $region48: #{tpu_custom_call.1} parent=43 // pred_fallthru
          _
      $region44: #{tpu_custom_call.1} parent=5 // pred_fallthru
        _
    $region6: #{tpu_custom_call.1} parent=1 // loop_footer
      %s19 = sadd.s32 1, %s15
    $region7: #{tpu_custom_call.1} parent=1 // loop_footer_branch
      %14 = sbr.rel target = $region3
    $region8: #{tpu_custom_call.1} parent=1 // loop_exit
      _
    %413 = vsyncpa [#allocation3], 1
    %s414 = scalar_lea.sflag [#allocation3], 1
    %415 = vsyncpa %s414, 1
    %416 = vsyncpa [#allocation4], 1
    %s417 = scalar_lea.sflag [#allocation4], 1
    %418 = vsyncpa %s417, 1

</llo_original>
